<compile_context>
chip_gen: v6e
topology: v6e:2x2x1
jax: 0.10.0
libtpu: 0.0.40
codegen_flags: <defaults>
</compile_context>

<pallas_src>
import functools

import jax
import jax.numpy as jnp
from jax.experimental import pallas as pl
from jax.experimental.pallas import tpu as pltpu


def _round_up(x, m):
    return (x + m - 1) // m * m


# ---------------------------------------------------------------------------
# Pass 1: h = x @ w1 (bias cancels under BN) + per-tile BN partial statistics.
# ---------------------------------------------------------------------------
def _linear1_stats_kernel(x_ref, w1_ref, h_ref, stats_ref):
    # MXU matmul: low-precision operands, f32 accumulation.
    h = jnp.dot(x_ref[...], w1_ref[...], preferred_element_type=jnp.float32)
    h_lo = h.astype(h_ref.dtype)          # bf16 storage of the hidden act.
    h_ref[...] = h_lo
    # Per-feature sum / sum-of-squares over the *rounded* values so pass 2
    # normalizes exactly what it reads.  Padded batch rows are exactly zero
    # (no bias), so no masking is needed.
    hs = h_lo.astype(jnp.float32)
    s1 = jnp.sum(hs, axis=0, keepdims=True)          # (1, H)
    s2 = jnp.sum(hs * hs, axis=0, keepdims=True)     # (1, H)
    stats_ref[0] = jnp.concatenate([s1, s2], axis=0)  # (2, H) partial stats


# ---------------------------------------------------------------------------
# Pass 2: out = relu((h - mean) * gamma * rsqrt(var + eps) + beta) @ w2 + b2.
# The BN fold is recomputed per tile (tiny; rsqrt goes to the EUP slot), which
# keeps the batch axis safely "parallel" (no cross-iteration state).
# ---------------------------------------------------------------------------
def _bn_relu_linear2_kernel(h_ref, stats_ref, gamma_ref, beta_ref, w2_ref,
                            b2_ref, o_ref, *, inv_n, eps):
    stats = stats_ref[...]                                  # (2, H) f32
    mean = stats[0:1, :] * inv_n
    var = jnp.maximum(stats[1:2, :] * inv_n - mean * mean, 0.0)
    scale = gamma_ref[...] * jax.lax.rsqrt(var + eps)       # rsqrt -> EUP
    shift = beta_ref[...] - mean * scale
    y = jnp.maximum(h_ref[...].astype(jnp.float32) * scale + shift, 0.0)
    out = jnp.dot(y.astype(w2_ref.dtype), w2_ref[...],
                  preferred_element_type=jnp.float32)
    o_ref[...] = out + b2_ref[...]


def mlp_forward(x, params, *, eps=1e-5, matmul_dtype=jnp.bfloat16,
                block_n=None):
    """x: [N, in_dim] float32. params: dict of w1,b1,gamma,beta,w2,b2."""
    n, d = x.shape
    h_dim = params["w1"].shape[1]
    o_dim = params["w2"].shape[1]

    f32 = jnp.float32
    mm_size = jnp.dtype(matmul_dtype).itemsize

    # Lane/MXU-friendly padded sizes.
    d_pad = _round_up(d, 128)
    h_pad = _round_up(h_dim, 128)
    o_pad = _round_up(o_dim, 128)

    vmem_cap = 48 << 20          # fits under v7x's 64 MiB; fine on v5e/v6e.

    def vmem_needed(tn):
        # Conservative: everything double-buffered, including resident weights.
        p1 = 2 * ((tn * d_pad + d_pad * h_pad) * mm_size
                  + tn * h_pad * mm_size + 2 * h_pad * 4)
        p2 = 2 * (tn * h_pad * mm_size + 4 * h_pad * 4
                  + h_pad * o_pad * mm_size + o_pad * 4 + tn * o_pad * 4)
        return max(p1, p2)

    if block_n is None:
        block_n = min(_round_up(n, 16), 1024)
    tn = _round_up(block_n, 16)
    while tn > 256 and vmem_needed(tn) > vmem_cap - (4 << 20):
        tn //= 2
    n_pad = _round_up(n, tn)
    n_tiles = n_pad // tn
    vmem_lim = int(min(max(vmem_needed(tn) + (4 << 20), 8 << 20), vmem_cap))

    def pad2(a, rows, cols, dtype):
        return jnp.pad(
            a, ((0, rows - a.shape[0]), (0, cols - a.shape[1]))).astype(dtype)

    x_p = pad2(x, n_pad, d_pad, matmul_dtype)
    w1_p = pad2(params["w1"], d_pad, h_pad, matmul_dtype)
    gamma_p = pad2(params["gamma"], 1, h_pad, f32)
    beta_p = pad2(params["beta"], 1, h_pad, f32)
    w2_p = pad2(params["w2"], h_pad, o_pad, matmul_dtype)
    b2_p = pad2(params["b2"], 1, o_pad, f32)
    # NOTE: params["b1"] is intentionally unused: a per-feature bias before
    # train-mode BatchNorm cancels exactly in the forward output.

    # ---------------- pass 1: h = x @ w1 and per-tile BN stats ---------------
    h_full, part_stats = pl.pallas_call(
        _linear1_stats_kernel,
        grid=(n_tiles,),
        in_specs=[
            pl.BlockSpec((tn, d_pad), lambda i: (i, 0)),        # x tile
            pl.BlockSpec((d_pad, h_pad), lambda i: (0, 0)),     # w1 (resident)
        ],
        out_specs=[
            pl.BlockSpec((tn, h_pad), lambda i: (i, 0)),        # h tile (bf16)
            pl.BlockSpec((1, 2, h_pad), lambda i: (i, 0, 0)),   # partial stats
        ],
        out_shape=[
            jax.ShapeDtypeStruct((n_pad, h_pad), matmul_dtype),
            jax.ShapeDtypeStruct((n_tiles, 2, h_pad), f32),
        ],
        compiler_params=pltpu.CompilerParams(
            dimension_semantics=("parallel",),      # megacore-shardable
            vmem_limit_bytes=vmem_lim),
        cost_estimate=pl.CostEstimate(
            flops=2 * n_pad * d_pad * h_pad + 3 * n_pad * h_pad,
            transcendentals=0,
            bytes_accessed=(n_pad * d_pad * mm_size + d_pad * h_pad * mm_size
                            + n_pad * h_pad * mm_size
                            + n_tiles * 2 * h_pad * 4)),
    )(x_p, w1_p)

    # Tiny (n_tiles, 2, H) -> (2, H) reduction; the BN fold lives in pass 2.
    stats = jnp.sum(part_stats, axis=0)

    # -------- pass 2: out = relu(BN(h)) @ w2 + b2 (fold done in-kernel) ------
    kern_b = functools.partial(_bn_relu_linear2_kernel, inv_n=1.0 / n, eps=eps)
    out_pad = pl.pallas_call(
        kern_b,
        grid=(n_tiles,),
        in_specs=[
            pl.BlockSpec((tn, h_pad), lambda i: (i, 0)),        # h tile (bf16)
            pl.BlockSpec((2, h_pad), lambda i: (0, 0)),         # stats
            pl.BlockSpec((1, h_pad), lambda i: (0, 0)),         # gamma
            pl.BlockSpec((1, h_pad), lambda i: (0, 0)),         # beta
            pl.BlockSpec((h_pad, o_pad), lambda i: (0, 0)),     # w2 (resident)
            pl.BlockSpec((1, o_pad), lambda i: (0, 0)),         # b2
        ],
        out_specs=pl.BlockSpec((tn, o_pad), lambda i: (i, 0)),
        out_shape=jax.ShapeDtypeStruct((n_pad, o_pad), f32),
        compiler_params=pltpu.CompilerParams(
            dimension_semantics=("parallel",),
            vmem_limit_bytes=vmem_lim),
        cost_estimate=pl.CostEstimate(
            flops=2 * n_pad * h_pad * o_pad + 4 * n_pad * h_pad,
            transcendentals=n_tiles * h_pad,
            bytes_accessed=(n_pad * h_pad * mm_size + 4 * h_pad * 4
                            + h_pad * o_pad * mm_size + o_pad * 4
                            + n_pad * o_pad * 4)),
    )(h_full, stats, gamma_p, beta_p, w2_p, b2_p)

    return out_pad[:n, :o_dim].astype(x.dtype)


def init_mlp_params(key, in_dim, out_dim, dtype=jnp.float32):
    """Deterministic init mimicking PyTorch Linear defaults (uniform +-1/sqrt(fan_in))."""
    hidden = 2 * in_dim
    k1, k2, k3, k4 = jax.random.split(key, 4)
    lim1 = 1.0 / (in_dim ** 0.5)
    lim2 = 1.0 / (hidden ** 0.5)
    return {
        "w1": jax.random.uniform(k1, (in_dim, hidden), dtype, -lim1, lim1),
        "b1": jax.random.uniform(k2, (1, hidden), dtype, -lim1, lim1),
        "gamma": jnp.ones((1, hidden), dtype),   # BatchNorm1d weight
        "beta": jnp.zeros((1, hidden), dtype),   # BatchNorm1d bias
        "w2": jax.random.uniform(k3, (hidden, out_dim), dtype, -lim2, lim2),
        "b2": jax.random.uniform(k4, (1, out_dim), dtype, -lim2, lim2),
    }


def mlp_reference(x, params, eps=1e-5, matmul_dtype=jnp.float32,
                  h_storage_dtype=None):
    """Pure-JAX reference (includes b1, which cancels under train-mode BN).

    matmul_dtype mirrors the kernel's MXU operand dtype; h_storage_dtype
    mirrors the kernel's low-precision hidden-activation storage.
    """
    f32 = jnp.float32
    h = jnp.dot(x.astype(matmul_dtype), params["w1"].astype(matmul_dtype),
                preferred_element_type=f32) + params["b1"].astype(f32)
    if h_storage_dtype is not None:
        h = h.astype(h_storage_dtype).astype(f32)
    mean = jnp.mean(h, axis=0, keepdims=True)
    var = jnp.mean((h - mean) ** 2, axis=0, keepdims=True)
    h = (h - mean) * jax.lax.rsqrt(var + eps)
    h = h * params["gamma"].astype(f32) + params["beta"].astype(f32)
    h = jnp.maximum(h, 0.0)
    return jnp.dot(h.astype(matmul_dtype), params["w2"].astype(matmul_dtype),
                   preferred_element_type=f32) + params["b2"].astype(f32)


if __name__ == "__main__":
    key = jax.random.PRNGKey(0)
    kx, kp, kx2, kp2 = jax.random.split(key, 4)

    # --- small demo shape (single batch tile) ---
    N, IN_DIM, OUT_DIM = 8, 32, 16
    x = jax.random.normal(kx, (N, IN_DIM), jnp.float32)
    params = init_mlp_params(kp, IN_DIM, OUT_DIM)

    out = jax.block_until_ready(mlp_forward(x, params))
    assert out.shape == (N, OUT_DIM)
    ref_lo = mlp_reference(x, params, matmul_dtype=jnp.bfloat16,
                           h_storage_dtype=jnp.bfloat16)
    assert jnp.allclose(out, ref_lo, atol=1e-2, rtol=1e-2), \
        "mismatch vs bf16 (mirrored-precision) reference"
    ref_f32 = mlp_reference(x, params, matmul_dtype=jnp.float32)
    assert jnp.allclose(out, ref_f32, atol=6e-2, rtol=6e-2), \
        "mismatch vs f32 reference"

    # --- multi-tile shape (batch tiling + per-tile partial BN stats, padded
    #     final tile) ---
    N2, IN2, OUT2 = 300, 48, 24
    x2 = jax.random.normal(kx2, (N2, IN2), jnp.float32)
    params2 = init_mlp_params(kp2, IN2, OUT2)
    out2 = jax.block_until_ready(mlp_forward(x2, params2, block_n=128))
    assert out2.shape == (N2, OUT2)
    ref2 = mlp_reference(x2, params2, matmul_dtype=jnp.bfloat16,
                         h_storage_dtype=jnp.bfloat16)
    assert jnp.allclose(out2, ref2, atol=1e-2, rtol=1e-2), \
        "mismatch (multi-tile) vs bf16 reference"

    print("KERNEL_OK")
</pallas_src>

<mosaic_0001>
module attributes {stable_mosaic.version = 11 : i64} {
  func.func @_linear1_stats_kernel(%arg0: i32, %arg1: memref<16x128xbf16, #tpu.memory_space<vmem>>, %arg2: memref<128x128xbf16, #tpu.memory_space<vmem>>, %arg3: memref<16x128xbf16, #tpu.memory_space<vmem>>, %arg4: memref<1x2x128xf32, #tpu.memory_space<vmem>>) attributes {dimension_semantics = [#tpu.dimension_semantics<parallel>], iteration_bounds = array<i64: 1>, scalar_prefetch = 0 : i64, scratch_operands = 0 : i64, tpu.core_type = #tpu.core_type<tc>, window_params = [{transform_indices = @transform_0, window_bounds = array<i64: 16, 128>}, {pipeline_mode = #tpu.pipeline_mode<synchronous>, transform_indices = @transform_1, window_bounds = array<i64: 128, 128>}, {transform_indices = @transform_2, window_bounds = array<i64: 16, 128>}, {transform_indices = @transform_3, window_bounds = array<i64: 1, 2, 128>}]} {
    %c0 = arith.constant 0 : index
    %c0_0 = arith.constant 0 : index
    %0 = vector.load %arg1[%c0, %c0_0] : memref<16x128xbf16, #tpu.memory_space<vmem>>, vector<16x128xbf16>
    %c0_1 = arith.constant 0 : index
    %c0_2 = arith.constant 0 : index
    %1 = vector.load %arg2[%c0_1, %c0_2] : memref<128x128xbf16, #tpu.memory_space<vmem>>, vector<128x128xbf16>
    %cst = arith.constant dense<0.000000e+00> : vector<16x128xf32>
    %2 = tpu.matmul %0, %1, %cst {dimension_numbers = #tpu.dot_dimension_numbers<[1], [0], [0], [1], [0, 0, 1, 1], [], []>} : vector<16x128xbf16>, vector<128x128xbf16>, vector<16x128xf32> -> vector<16x128xf32>
    %3 = arith.truncf %2 : vector<16x128xf32> to vector<16x128xbf16>
    %c0_3 = arith.constant 0 : index
    %c0_4 = arith.constant 0 : index
    %4 = vector.load %arg3[%c0_3, %c0_4] : memref<16x128xbf16, #tpu.memory_space<vmem>>, vector<16x128xbf16>
    tpu.vector_store %arg3[%c0_3, %c0_4], %3 {strides = array<i32>} : memref<16x128xbf16, #tpu.memory_space<vmem>>, vector<16x128xbf16>,
    %5 = arith.extf %3 : vector<16x128xbf16> to vector<16x128xf32>
    %cst_5 = arith.constant dense<0.000000e+00> : vector<128xf32>
    %6 = vector.multi_reduction <add>, %5, %cst_5 [0] : vector<16x128xf32> to vector<128xf32>
    %7 = vector.shape_cast %6 : vector<128xf32> to vector<1x128xf32>
    %8 = arith.mulf %5, %5 : vector<16x128xf32>
    %cst_6 = arith.constant dense<0.000000e+00> : vector<128xf32>
    %9 = vector.multi_reduction <add>, %8, %cst_6 [0] : vector<16x128xf32> to vector<128xf32>
    %10 = vector.shape_cast %9 : vector<128xf32> to vector<1x128xf32>
    %11 = tpu.concatenate %7, %10 in 0 : vector<1x128xf32>, vector<1x128xf32> -> vector<2x128xf32>
    %c0_7 = arith.constant 0 : index
    %c0_8 = arith.constant 0 : index
    %c0_9 = arith.constant 0 : index
    %12 = vector.load %arg4[%c0_7, %c0_8, %c0_9] : memref<1x2x128xf32, #tpu.memory_space<vmem>>, vector<1x2x128xf32>
    %13 = vector.shape_cast %12 : vector<1x2x128xf32> to vector<2x128xf32>
    %14 = vector.shape_cast %11 : vector<2x128xf32> to vector<1x2x128xf32>
    tpu.vector_store %arg4[%c0_7, %c0_8, %c0_9], %14 {strides = array<i32>} : memref<1x2x128xf32, #tpu.memory_space<vmem>>, vector<1x2x128xf32>,
    return
  }
  func.func @transform_0(%arg0: i32) -> (i32, i32) {
    %c0_i32 = arith.constant 0 : i32
    %c0_i32_0 = arith.constant 0 : i32
    return %arg0, %c0_i32 : i32, i32
  }
  func.func @transform_1(%arg0: i32) -> (i32, i32) {
    %c0_i32 = arith.constant 0 : i32
    %c0_i32_0 = arith.constant 0 : i32
    %c0_i32_1 = arith.constant 0 : i32
    return %c0_i32, %c0_i32_0 : i32, i32
  }
  func.func @transform_2(%arg0: i32) -> (i32, i32) {
    %c0_i32 = arith.constant 0 : i32
    %c0_i32_0 = arith.constant 0 : i32
    return %arg0, %c0_i32 : i32, i32
  }
  func.func @transform_3(%arg0: i32) -> (i32, i32, i32) {
    %c0_i32 = arith.constant 0 : i32
    %c0_i32_0 = arith.constant 0 : i32
    %c0_i32_1 = arith.constant 0 : i32
    return %arg0, %c0_i32, %c0_i32_0 : i32, i32, i32
  }
}

</mosaic_0001>

<llo_original>
// kernel: tpu_custom_call.1
$region0: #{tpu_custom_call.1}
  #allocation0 [shape = 'u32[]', space=smem, size = 0x4, offset = 0x4, fixed_abs, tag = 'smem constant byte address 0x4 - core index']
  #allocation1 [shape = 'u32[144,128]{1,0:T(1,128)}', space=vmem, size = 0x12000, scoped, tag = 'internal scratch']
  %s0 = inlined_call_operand.hbm [shape: bf16[16,128], index: 0, kind: input, shape index: {}]
  %s1 = inlined_call_operand.hbm [shape: bf16[128,128], index: 1, kind: input, shape index: {}]
  %s2 = inlined_call_operand.hbm [shape: bf16[16,128], index: 2, kind: output, shape index: {0}]
  %s3 = inlined_call_operand.hbm [shape: f32[1,2,128], index: 3, kind: output, shape index: {1}]
  %4 = xla_tuple %s2, %s3
  %s5 = sld [smem:[#allocation0]]
  $region34: #{tpu_custom_call.1} parent=0
    _
  %s7 = ssub.s32 1, %s5
  %s8 = scalar_select 0, %s7, %s5
  $region1: #{tpu_custom_call.1} parent=0
    #allocation2 [shape = 'u8[4096]{0}', space=vmem, size = 0x1000, scoped, tag = 'input window, operand 0, single buffered']
    #allocation3 [shape = 's32[1]{0}', space=sflag, size = 0x4, scoped, tag = 'scoped memory for tpu_custom_call.1']
    #allocation4 [shape = 's32[1]{0}', space=sflag, size = 0x4, scoped, tag = 'scoped memory for tpu_custom_call.1']
    #allocation5 [shape = 'u8[32768]{0}', space=vmem, size = 0x8000, scoped, tag = 'input window, operand 1, single buffered']
    #allocation6 [shape = 's32[1]{0}', space=sflag, size = 0x4, scoped, tag = 'scoped memory for tpu_custom_call.1']
    #allocation7 [shape = 'u8[4096]{0}', space=vmem, size = 0x1000, scoped, tag = 'output window, operand 0, single buffered']
    #allocation8 [shape = 'u8[1024]{0}', space=vmem, size = 0x400, scoped, tag = 'output window, operand 1, single buffered']
    #allocation9 [shape = 's32[1]{0}', space=sflag, size = 0x4, scoped, tag = 'scoped memory for tpu_custom_call.1']
    %9 = vsyncpa [#allocation3], 0
    %10 = vsyncpa [#allocation6], 0
    %11 = vsyncpa [#allocation4], 0
    %12 = vsyncpa [#allocation9], 0
    // Predicated region
    $region2: #{tpu_custom_call.1} parent=1 // pred_check
      _
    $region3: #{tpu_custom_call.1} parent=1 // pred_check_branch
      %14 = sbr.rel (0) target = $region5
    $region4: #{tpu_custom_call.1} parent=1 // pred_region
      %s16 = ssub.s32 128, 128
      %17 = vsyncadd [#allocation3], %s16
      %s18 = sshll.u32 [#allocation2], 4
      %s19 = int_to_ptr.vmem [resolvable:$true] %s18
      %24 = dma.hbm_to_vmem [thread:$0]  %s0, 128, %s19, [#allocation3], 64, 64, 4
    $region5: #{tpu_custom_call.1} parent=1 // pred_fallthru
      _
    // Predicated region
    $region6: #{tpu_custom_call.1} parent=1 // pred_check
      _
    $region7: #{tpu_custom_call.1} parent=1 // pred_check_branch
      %26 = sbr.rel (0) target = $region9
    $region8: #{tpu_custom_call.1} parent=1 // pred_region
      %s28 = ssub.s32 1024, 1024
      %29 = vsyncadd [#allocation6], %s28
      %s30 = sshll.u32 [#allocation5], 4
      %s31 = int_to_ptr.vmem [resolvable:$true] %s30
      %36 = dma.hbm_to_vmem [thread:$0]  %s1, 1024, %s31, [#allocation6], 64, 64, 4
    $region9: #{tpu_custom_call.1} parent=1 // pred_fallthru
      _
    // Predicated region
    $region10: #{tpu_custom_call.1} parent=1 // pred_check
      _
    $region11: #{tpu_custom_call.1} parent=1 // pred_check_branch
      %38 = sbr.rel (0) target = $region13
    $region12: #{tpu_custom_call.1} parent=1 // pred_region
      %39 = dma.done [#allocation3], 128
    $region13: #{tpu_custom_call.1} parent=1 // pred_fallthru
      _
    // Predicated region
    $region14: #{tpu_custom_call.1} parent=1 // pred_check
      _
    $region15: #{tpu_custom_call.1} parent=1 // pred_check_branch
      %41 = sbr.rel (0) target = $region17
    $region16: #{tpu_custom_call.1} parent=1 // pred_region
      %42 = dma.done [#allocation6], 1024
    $region17: #{tpu_custom_call.1} parent=1 // pred_fallthru
      _
    %v44 = vld [vmem:[#allocation2] sm:$0xf]
    %v45 = vld [vmem:[#allocation2 + $0x4] sm:$0xf]
    %v46 = vld [vmem:[#allocation5] sm:$0xf]
    %v47 = vld [vmem:[#allocation5 + $0x4] sm:$0xf]
    %v48 = vld [vmem:[#allocation5 + $0x8] sm:$0xf]
    %v49 = vld [vmem:[#allocation5 + $0xc] sm:$0xf]
    %v50 = vld [vmem:[#allocation5 + $0x10] sm:$0xf]
    %v51 = vld [vmem:[#allocation5 + $0x14] sm:$0xf]
    %v52 = vld [vmem:[#allocation5 + $0x18] sm:$0xf]
    %v53 = vld [vmem:[#allocation5 + $0x1c] sm:$0xf]
    %v54 = vld [vmem:[#allocation5 + $0x20] sm:$0xf]
    %v55 = vld [vmem:[#allocation5 + $0x24] sm:$0xf]
    %v56 = vld [vmem:[#allocation5 + $0x28] sm:$0xf]
    %v57 = vld [vmem:[#allocation5 + $0x2c] sm:$0xf]
    %v58 = vld [vmem:[#allocation5 + $0x30] sm:$0xf]
    %v59 = vld [vmem:[#allocation5 + $0x34] sm:$0xf]
    %v60 = vld [vmem:[#allocation5 + $0x38] sm:$0xf]
    %v61 = vld [vmem:[#allocation5 + $0x3c] sm:$0xf]
    %v64 = vunpack.c.l.b16 %v44
    %v65 = vunpack.c.l.b16 %v45
    %v66 = vpack.c.b16 %v65, %v64
    %v84 = vunpack.c.l.b16 %v46
    %v85 = vunpack.c.l.b16 %v47
    %v86 = vunpack.c.l.b16 %v48
    %v87 = vunpack.c.l.b16 %v49
    %v88 = vunpack.c.l.b16 %v50
    %v89 = vunpack.c.l.b16 %v51
    %v90 = vunpack.c.l.b16 %v52
    %v91 = vunpack.c.l.b16 %v53
    %v92 = vunpack.c.l.b16 %v54
    %v93 = vunpack.c.l.b16 %v55
    %v94 = vunpack.c.l.b16 %v56
    %v95 = vunpack.c.l.b16 %v57
    %v96 = vunpack.c.l.b16 %v58
    %v97 = vunpack.c.l.b16 %v59
    %v98 = vunpack.c.l.b16 %v60
    %v99 = vunpack.c.l.b16 %v61
    %v100 = vpack.c.b16 %v85, %v84
    %v101 = vpack.c.b16 %v87, %v86
    %v102 = vpack.c.b16 %v89, %v88
    %v103 = vpack.c.b16 %v91, %v90
    %v104 = vpack.c.b16 %v93, %v92
    %v105 = vpack.c.b16 %v95, %v94
    %v106 = vpack.c.b16 %v97, %v96
    %v107 = vpack.c.b16 %v99, %v98
    %116 = vmatprep.subr.bf16.mxu0 0
    %117 = vmatpush1.bf16.msra.mxu0 %v107
    %118 = vmatprep.subr.bf16.mxu0 0
    %119 = vmatpush1.bf16.msra.mxu0 %v106
    %120 = vmatprep.subr.bf16.mxu0 0
    %121 = vmatpush1.bf16.msra.mxu0 %v105
    %122 = vmatprep.subr.bf16.mxu0 0
    %123 = vmatpush1.bf16.msra.mxu0 %v104
    %124 = vmatprep.subr.bf16.mxu0 0
    %125 = vmatpush1.bf16.msra.mxu0 %v103
    %126 = vmatprep.subr.bf16.mxu0 0
    %127 = vmatpush1.bf16.msra.mxu0 %v102
    %128 = vmatprep.subr.bf16.mxu0 0
    %129 = vmatpush1.bf16.msra.mxu0 %v101
    %130 = vmatprep.subr.bf16.mxu0 0
    %131 = vmatpush1.bf16.msra.mxu0 %v100
    %132 = vmatprep.subr.bf16.mxu0 0
    %133 = vmatpush2.bf16.msra.mxu0 0
    %134 = vmatprep.subr.bf16.mxu0 0
    %135 = vmatpush2.bf16.msra.mxu0 0
    %136 = vmatprep.subr.bf16.mxu0 0
    %137 = vmatpush2.bf16.msra.mxu0 0
    %138 = vmatprep.subr.bf16.mxu0 0
    %139 = vmatpush2.bf16.msra.mxu0 0
    %140 = vmatprep.subr.bf16.mxu0 0
    %141 = vmatpush2.bf16.msra.mxu0 0
    %142 = vmatprep.subr.bf16.mxu0 0
    %143 = vmatpush2.bf16.msra.mxu0 0
    %144 = vmatprep.subr.bf16.mxu0 0
    %145 = vmatpush2.bf16.msra.mxu0 0
    %146 = vmatprep.subr.bf16.mxu0 0
    %147 = vmatpush2.bf16.msra.mxu0 0
    %148 = vmatprep.mubr.bf16.mxu0 0
    %149 = vmatmul.mubr.bf16.gmra.mxu0 %v66
    %v150 = vpop.f32.mrf.mxu0
    %v151 = vadd.f32 0.0, %v150
    %v152 = vpop.f32.mrf.mxu0
    %v153 = vpop.f32.mrf.mxu0
    %v154 = vadd.f32 0.0, %v153
    %v155 = vpop.f32.mrf.mxu0
    %156 = vdwg.mxu0
    %v157 = vpack.c.bf16 %v154, %v151
    %v159 = vunpack.c.l.b16 %v157
    %v160 = vunpack.c.h.b16 %v157
    %v161 = vpack.c.b16 %v159, %v159
    %v162 = vpack.c.b16 %v160, %v160
    %165 = vst [vmem:[#allocation7] sm:$0xf] %v161
    %166 = vst [vmem:[#allocation7 + $0x4] sm:$0xf] %v162
    %v167 = vunpack.c.l.bf16 %v157
    %v168 = vunpack.c.h.bf16 %v157
    %v169 = vadd.f32 %v167, %v168
    %v170 = vrot.slane %v169, 4
    %v171 = vadd.f32 %v169, %v170
    %v172 = vrot.slane %v171, 2
    %v173 = vadd.f32 %v171, %v172
    %v174 = vrot.slane %v173, 1
    %v175 = vadd.f32 %v173, %v174
    %v176 = vmul.f32 %v167, %v167
    %v177 = vmul.f32 %v168, %v168
    %v178 = vadd.f32 %v176, %v177
    %v179 = vrot.slane %v178, 4
    %v180 = vadd.f32 %v178, %v179
    %v181 = vrot.slane %v180, 2
    %v182 = vadd.f32 %v180, %v181
    %v183 = vrot.slane %v182, 1
    %v184 = vadd.f32 %v182, %v183
    %vm185 = vcmask 1040384
    %v186 = vsel %vm185, %v175, %v184
    %187 = vst [vmem:[#allocation8] sm:$0x3] %v186
    // Predicated region
    $region18: #{tpu_custom_call.1} parent=1 // pred_check
      _
    $region19: #{tpu_custom_call.1} parent=1 // pred_check_branch
      %189 = sbr.rel (0) target = $region21
    $region20: #{tpu_custom_call.1} parent=1 // pred_region
      %s191 = ssub.s32 128, 128
      %192 = vsyncadd [#allocation4], %s191
      %s193 = sshll.u32 [#allocation7], 4
      %s194 = int_to_ptr.vmem [resolvable:$true] %s193
      %199 = dma.vmem_to_hbm [thread:$0]  %s194, 128, %s2, [#allocation4], 64, 64, 4
    $region21: #{tpu_custom_call.1} parent=1 // pred_fallthru
      _
    // Predicated region
    $region22: #{tpu_custom_call.1} parent=1 // pred_check
      _
    $region23: #{tpu_custom_call.1} parent=1 // pred_check_branch
      %201 = sbr.rel (0) target = $region25
    $region24: #{tpu_custom_call.1} parent=1 // pred_region
      %s203 = ssub.s32 32, 32
      %204 = vsyncadd [#allocation9], %s203
      %s206 = sshll.u32 [#allocation8], 4
      %s207 = int_to_ptr.vmem [resolvable:$true] %s206
      %209 = dma.vmem_to_hbm [thread:$0]  %s207, 32, %s3, [#allocation9]
    $region25: #{tpu_custom_call.1} parent=1 // pred_fallthru
      _
    // Predicated region
    $region26: #{tpu_custom_call.1} parent=1 // pred_check
      _
    $region27: #{tpu_custom_call.1} parent=1 // pred_check_branch
      %211 = sbr.rel (0) target = $region29
    $region28: #{tpu_custom_call.1} parent=1 // pred_region
      %212 = dma.done [#allocation4], 128
    $region29: #{tpu_custom_call.1} parent=1 // pred_fallthru
      _
    // Predicated region
    $region30: #{tpu_custom_call.1} parent=1 // pred_check
      _
    $region31: #{tpu_custom_call.1} parent=1 // pred_check_branch
      %214 = sbr.rel (0) target = $region33
    $region32: #{tpu_custom_call.1} parent=1 // pred_region
      %215 = dma.done [#allocation9], 32
    $region33: #{tpu_custom_call.1} parent=1 // pred_fallthru
      _
    %216 = vsyncpa [#allocation3], 1
    %217 = vsyncpa [#allocation6], 1
    %218 = vsyncpa [#allocation4], 1
    %219 = vsyncpa [#allocation9], 1

</llo_original>
